<compile_context>
chip_gen: v7x
topology: tpu7x:2x2x1
jax: 0.10.0
libtpu: 0.0.40
codegen_flags: <defaults>
</compile_context>

<pallas_src>
import itertools

import numpy as np
import jax
import jax.numpy as jnp
from jax.experimental import pallas as pl
from jax.experimental.pallas import tpu as pltpu

CLASS_WEIGHT = 1.0
L1_WEIGHT = 5.0
GIOU_WEIGHT = 2.0
NUM_CLASSES = 1
EOS_COEF = 0.1
EPS = 1e-8
COST_DTYPE = jnp.bfloat16          # bf16 halves writeback + host transfer
COST_VMEM_LIMIT = 32 * 1024 * 1024  # above v5e's 16 MiB default, safe on all gens


def _round_up(x, m):
    return ((x + m - 1) // m) * m


# ---------------------------------------------------------------------------
# Kernel 1: HungarianMatcher cost matrix, (T, Q) oriented, a block of images
# per grid step.
# ---------------------------------------------------------------------------
def _cost_matrix_kernel(logits_ref, pboxes_ref, tboxes_ref, tlabels_ref,
                        cost_ref):
    logits = logits_ref[...].astype(jnp.float32)    # (BB, C1, Qp) lane-dense
    pb = pboxes_ref[...].astype(jnp.float32)        # (BB, 4, Qp) lane-dense
    tb = tboxes_ref[...].astype(jnp.float32)        # (BB, Tp, 4)
    labels = tlabels_ref[...]                       # (BB, Tp, 1) int32

    C1 = logits.shape[1]

    # softmax over the class (sublane) axis
    m = jnp.max(logits, axis=1, keepdims=True)
    e = jnp.exp(logits - m)
    prob = e / jnp.sum(e, axis=1, keepdims=True)    # (BB, C1, Qp)

    # class cost: -prob[labels[t], q]
    if C1 <= 8:
        # tiny class count (DETR default here is 2): VPU select, no one-hot matmul
        class_gather = (labels == 0).astype(jnp.float32) * prob[:, 0:1, :]
        for c in range(1, C1):
            class_gather = class_gather + (
                (labels == c).astype(jnp.float32) * prob[:, c:c + 1, :])
    else:
        # MXU one-hot matmul with bf16 operands (MXU-native), f32 accumulate
        onehot = (jax.lax.broadcasted_iota(
            jnp.int32, labels.shape[:2] + (C1,), 2) == labels
        ).astype(jnp.bfloat16)                                   # (BB, Tp, C1)
        class_gather = jnp.einsum('btc,bcq->btq', onehot,
                                  prob.astype(jnp.bfloat16),
                                  preferred_element_type=jnp.float32)

    # pred coords: lane-dense rows (BB, 1, Qp); target coords: sublane cols (BB, Tp, 1)
    px1, py1 = pb[:, 0:1, :], pb[:, 1:2, :]
    px2, py2 = pb[:, 2:3, :], pb[:, 3:4, :]
    tx1, ty1 = tb[:, :, 0:1], tb[:, :, 1:2]
    tx2, ty2 = tb[:, :, 2:3], tb[:, :, 3:4]

    # pairwise L1                                                  (BB, Tp, Qp)
    l1 = (jnp.abs(px1 - tx1) + jnp.abs(py1 - ty1)
          + jnp.abs(px2 - tx2) + jnp.abs(py2 - ty2))

    # pairwise generalized IoU (eps-guarded, EUP approx reciprocals)
    area_p = (px2 - px1) * (py2 - py1)
    area_t = (tx2 - tx1) * (ty2 - ty1)
    iw = jnp.maximum(jnp.minimum(px2, tx2) - jnp.maximum(px1, tx1), 0.0)
    ih = jnp.maximum(jnp.minimum(py2, ty2) - jnp.maximum(py1, ty1), 0.0)
    inter = iw * ih
    union = area_p + area_t - inter
    iou = inter * pl.reciprocal(union + EPS, approx=True)
    enc_w = jnp.maximum(px2, tx2) - jnp.minimum(px1, tx1)
    enc_h = jnp.maximum(py2, ty2) - jnp.minimum(py1, ty1)
    earea = enc_w * enc_h
    giou = iou - (earea - union) * pl.reciprocal(earea + EPS, approx=True)

    cost = (CLASS_WEIGHT * (-class_gather)
            + L1_WEIGHT * l1
            + GIOU_WEIGHT * (-giou))
    cost_ref[...] = cost.astype(cost_ref.dtype)


@jax.jit
def cost_matrices(logits, pboxes, tboxes, tlabels):
    """logits (B,Q,C1), pboxes (B,Q,4), tboxes (B,T,4), tlabels (B,T)
    -> cost (Bp, Tp, Qp) in COST_DTYPE, (target, pred) oriented."""
    B, Q, C1 = logits.shape
    T = tboxes.shape[1]
    Qp = _round_up(max(Q, 1), 128)   # predictions lane-dense
    Tp = _round_up(max(T, 1), 8)     # targets only need a sublane multiple
    BB = (B + 1) // 2 if B <= 8 else 8   # >= 2 grid steps when B >= 2 (v7x)
    Bp = _round_up(B, BB)

    # lane-dense prediction layouts
    logits_t = jnp.pad(jnp.transpose(logits, (0, 2, 1)),
                       ((0, Bp - B), (0, 0), (0, Qp - Q)))          # (Bp, C1, Qp)
    pboxes_t = jnp.pad(jnp.transpose(pboxes, (0, 2, 1)),
                       ((0, Bp - B), (0, 0), (0, Qp - Q)))          # (Bp, 4, Qp)
    tboxes_p = jnp.pad(tboxes, ((0, Bp - B), (0, Tp - T), (0, 0)))  # (Bp, Tp, 4)
    tlabels_p = jnp.pad(tlabels.astype(jnp.int32),
                        ((0, Bp - B), (0, Tp - T)))[..., None]      # (Bp, Tp, 1)

    return pl.pallas_call(
        _cost_matrix_kernel,
        out_shape=jax.ShapeDtypeStruct((Bp, Tp, Qp), COST_DTYPE),
        grid=(Bp // BB,),
        in_specs=[
            pl.BlockSpec((BB, C1, Qp), lambda b: (b, 0, 0)),
            pl.BlockSpec((BB, 4, Qp), lambda b: (b, 0, 0)),
            pl.BlockSpec((BB, Tp, 4), lambda b: (b, 0, 0)),
            pl.BlockSpec((BB, Tp, 1), lambda b: (b, 0, 0)),
        ],
        out_specs=pl.BlockSpec((BB, Tp, Qp), lambda b: (b, 0, 0)),
        compiler_params=pltpu.CompilerParams(
            dimension_semantics=("parallel",),
            vmem_limit_bytes=COST_VMEM_LIMIT),
    )(logits_t, pboxes_t, tboxes_p, tlabels_p)


# ---------------------------------------------------------------------------
# Kernel 2: cardinality count (independent of the matching -> dispatched
# before the host sync so it overlaps the scipy Hungarian loop).
# ---------------------------------------------------------------------------
def _cardinality_kernel(scores_ref, out_ref):
    s = scores_ref[...].astype(jnp.float32)          # (B*Q, C1)
    if s.shape[-1] > 1:
        is_obj = (jnp.max(s[:, 1:], axis=-1, keepdims=True)
                  > s[:, 0:1]).astype(jnp.float32)   # (B*Q, 1); 0 on padding
        card = jnp.sum(is_obj, keepdims=True)        # (1, 1)
    else:
        card = jnp.zeros((1, 1), jnp.float32)        # argmax of 1 class is always 0
    lane = jax.lax.broadcasted_iota(jnp.int32, (1, 128), 1)
    out_ref[...] = jnp.where(lane == 0, card, 0.0)


@jax.jit
def cardinality_count(scores):
    B, Q, C1 = scores.shape
    s2 = scores.reshape(B * Q, C1)                   # rows on sublanes, no transpose
    return pl.pallas_call(
        _cardinality_kernel,
        out_shape=jax.ShapeDtypeStruct((1, 128), jnp.float32),
        grid=(1,),
        in_specs=[pl.BlockSpec((B * Q, C1), lambda i: (0, 0))],
        out_specs=pl.BlockSpec((1, 128), lambda i: (0, 0)),
    )(s2)


# ---------------------------------------------------------------------------
# Kernel 3: fused loss sums (L1, diag-GIoU, weighted CE, weight sum), packed
# into a single (1,128) output.  Rows-on-sublanes layout, no wrapper transposes.
# ---------------------------------------------------------------------------
def _loss_sums_kernel(apb_ref, atb_ref, valid_ref, logits_ref, labels_ref,
                      out_ref):
    valid = valid_ref[...].astype(jnp.float32)       # (Mp, 1); 0 on padded rows
    apb = apb_ref[...].astype(jnp.float32) * valid   # (Mp, 4)
    atb = atb_ref[...].astype(jnp.float32) * valid   # (Mp, 4)

    l1_sum = jnp.sum(jnp.abs(apb - atb), keepdims=True)             # (1,1)

    px1, py1, px2, py2 = apb[:, 0:1], apb[:, 1:2], apb[:, 2:3], apb[:, 3:4]
    tx1, ty1, tx2, ty2 = atb[:, 0:1], atb[:, 1:2], atb[:, 2:3], atb[:, 3:4]
    area_p = (px2 - px1) * (py2 - py1)
    area_t = (tx2 - tx1) * (ty2 - ty1)
    iw = jnp.maximum(jnp.minimum(px2, tx2) - jnp.maximum(px1, tx1), 0.0)
    ih = jnp.maximum(jnp.minimum(py2, ty2) - jnp.maximum(py1, ty1), 0.0)
    inter = iw * ih
    union = area_p + area_t - inter
    iou = inter / (union + EPS)                      # exact divide: final loss value
    enc_w = jnp.maximum(px2, tx2) - jnp.minimum(px1, tx1)
    enc_h = jnp.maximum(py2, ty2) - jnp.minimum(py1, ty1)
    earea = enc_w * enc_h
    giou = (iou - (earea - union) / (earea + EPS)) * valid           # (Mp,1)
    giou_sum = jnp.sum(giou, keepdims=True)                          # (1,1)

    # weighted cross-entropy: aligned rows on sublanes, classes on lanes
    logits = logits_ref[...].astype(jnp.float32)     # (Np, C1)
    labels = labels_ref[...]                         # (Np, 1) int32; -1 on padding
    m = jnp.max(logits, axis=-1, keepdims=True)
    lse = m + jnp.log(jnp.sum(jnp.exp(logits - m), axis=-1, keepdims=True))
    cls_iota = jax.lax.broadcasted_iota(jnp.int32, logits.shape, 1)
    onehot = (cls_iota == labels).astype(jnp.float32)                # all-zero on padding
    nll = -jnp.sum((logits - lse) * onehot, axis=-1, keepdims=True)  # (Np, 1)
    ew = jnp.where(cls_iota == 0, EOS_COEF, 1.0)     # empty_weight built in-kernel
    w = jnp.sum(ew * onehot, axis=-1, keepdims=True)                 # (Np, 1)
    ce_wsum = jnp.sum(w * nll, keepdims=True)        # (1,1)
    w_sum = jnp.sum(w, keepdims=True)                # (1,1)

    lane = jax.lax.broadcasted_iota(jnp.int32, (1, 128), 1)
    out_ref[...] = (jnp.where(lane == 0, l1_sum, 0.0)
                    + jnp.where(lane == 1, giou_sum, 0.0)
                    + jnp.where(lane == 2, ce_wsum, 0.0)
                    + jnp.where(lane == 3, w_sum, 0.0))


@jax.jit
def loss_sums(apb, atb, valid, logits_al, labels_al):
    Mp = apb.shape[0]
    Np, C1 = logits_al.shape
    return pl.pallas_call(
        _loss_sums_kernel,
        out_shape=jax.ShapeDtypeStruct((1, 128), jnp.float32),
        grid=(1,),
        in_specs=[
            pl.BlockSpec((Mp, 4), lambda i: (0, 0)),
            pl.BlockSpec((Mp, 4), lambda i: (0, 0)),
            pl.BlockSpec((Mp, 1), lambda i: (0, 0)),
            pl.BlockSpec((Np, C1), lambda i: (0, 0)),
            pl.BlockSpec((Np, 1), lambda i: (0, 0)),
        ],
        out_specs=pl.BlockSpec((1, 128), lambda i: (0, 0)),
    )(apb, atb, valid, logits_al, labels_al)


# ---------------------------------------------------------------------------
# Host-side assignment (Hungarian via scipy when available, else brute force).
# Cost matrices are (T, Q): rows = targets, cols = predictions.
# ---------------------------------------------------------------------------
def _brute_force_assignment(cost_np):
    # TODO(synk): factorial fallback, only used when scipy is unavailable; assumes rows <= cols.
    R, C = cost_np.shape
    rows = np.arange(R)
    best_perm, best_cost = None, np.inf
    for perm in itertools.permutations(range(C), R):
        c = cost_np[rows, list(perm)].sum()
        if c < best_cost:
            best_cost, best_perm = c, perm
    return rows.astype(np.int64), np.array(best_perm, dtype=np.int64)


try:
    from scipy.optimize import linear_sum_assignment as _lsa

    def _optimal_assignment(cost_np):
        r, c = _lsa(cost_np)
        return np.asarray(r, dtype=np.int64), np.asarray(c, dtype=np.int64)
except ImportError:  # pragma: no cover
    _optimal_assignment = _brute_force_assignment


# ---------------------------------------------------------------------------
# Forward pass (mirrors BipartiteMatchingLoss.forward).
# ---------------------------------------------------------------------------
def bipartite_matching_loss(prediction, targets):
    logits = prediction['logits']     # (B, Q, C1)
    boxes = prediction['boxes']       # (B, Q, 4)
    scores = prediction['scores']     # (B, Q, C1)
    B, Q, C1 = logits.shape

    target_counts = [int(t['labels'].shape[0]) for t in targets]
    target_objects = int(sum(target_counts))
    Tmax = max(target_counts) if target_counts else 0

    # 0) cardinality dispatched first: its device work overlaps the host
    #    Hungarian step (it does not depend on the matching).
    card_packed = cardinality_count(scores)
    pred_objects = card_packed[0, 0].astype(jnp.int32)
    cardinality_error = target_objects - pred_objects

    if Tmax == 0:
        # TODO(synk): the torch reference raises on torch.cat([]) with zero targets;
        # return zero losses instead of faking that failure.
        zero = jnp.float32(0.0)
        return {'classification': zero, 'regression': zero,
                'cardinality_error': cardinality_error, 'loss': zero}

    tboxes = jnp.stack([
        jnp.pad(t['boxes'].astype(jnp.float32), ((0, Tmax - c), (0, 0)))
        for t, c in zip(targets, target_counts)])                    # (B, Tmax, 4)
    tlabels = jnp.stack([
        jnp.pad(t['labels'].astype(jnp.int32), ((0, Tmax - c),))
        for t, c in zip(targets, target_counts)])                    # (B, Tmax)

    # 1) matcher cost matrices on TPU; single blocking device->host sync
    #    (bf16 cost + tiny label table together).
    cost = cost_matrices(logits, boxes, tboxes, tlabels)             # (Bp, Tp, Qp)
    cost_host, tlabels_host = jax.device_get((cost, tlabels))
    cost_np = np.asarray(cost_host, dtype=np.float32)
    tlabels_np = np.asarray(tlabels_host)

    # 2) host Hungarian assignment per image (cost is (targets, preds))
    mb, mp_, mt = [], [], []      # matched (batch, pred, tgt) indices
    ab, ap_ = [], []              # aligned rows for CE: matched then unmatched
    labels_list = []
    for b in range(B):
        c = target_counts[b]
        if c == 0:
            continue
        tgt_ids, pred_ids = _optimal_assignment(cost_np[b, :c, :Q])
        matched = set(int(p) for p in pred_ids)
        for t_idx, p_idx in zip(tgt_ids, pred_ids):
            mb.append(b); mp_.append(int(p_idx)); mt.append(int(t_idx))
            ab.append(b); ap_.append(int(p_idx))
            labels_list.append(int(tlabels_np[b, int(t_idx)]))
        for i in range(Q):
            if i in matched:
                continue
            ab.append(b); ap_.append(i)
            labels_list.append(0)

    M = len(mb)                        # matched boxes (num_boxes)
    N = len(ab)                        # aligned CE rows
    Mp = _round_up(max(M, 1), 128)     # fixed buckets -> stable shapes, no
    Np = _round_up(max(N, 1), 128)     # per-step recompilation

    def _pad_idx(lst, n):
        a = np.zeros((n,), np.int32)
        a[:len(lst)] = lst
        return a

    mb_a = jnp.asarray(_pad_idx(mb, Mp))
    mp_a = jnp.asarray(_pad_idx(mp_, Mp))
    mt_a = jnp.asarray(_pad_idx(mt, Mp))
    ab_a = jnp.asarray(_pad_idx(ab, Np))
    ap_a = jnp.asarray(_pad_idx(ap_, Np))
    valid_np = np.zeros((Mp, 1), np.float32); valid_np[:M, 0] = 1.0
    labels_np = np.full((Np, 1), -1, np.int32); labels_np[:N, 0] = labels_list

    # 3) alignment gathers stay on device, at bucketed static shapes
    ap_boxes = boxes[mb_a, mp_a]       # (Mp, 4)
    at_boxes = tboxes[mb_a, mt_a]      # (Mp, 4)
    logits_al = logits[ab_a, ap_a]     # (Np, C1)

    # 4) fused loss sums on TPU, one packed output
    packed = loss_sums(ap_boxes, at_boxes, jnp.asarray(valid_np),
                       logits_al, jnp.asarray(labels_np))
    l1_sum, giou_sum = packed[0, 0], packed[0, 1]
    ce_wsum, w_sum = packed[0, 2], packed[0, 3]

    num_boxes = M
    l1_loss = (l1_sum / num_boxes) * L1_WEIGHT
    giou_loss = ((num_boxes - giou_sum) / num_boxes) * GIOU_WEIGHT
    regression = l1_loss + giou_loss
    classification = (ce_wsum / w_sum) * CLASS_WEIGHT

    return {'classification': classification,
            'regression': regression,
            'cardinality_error': cardinality_error,
            'loss': classification + regression}


if __name__ == "__main__":
    key = jax.random.PRNGKey(0)
    B, Q, T = 2, 8, 3
    C1 = NUM_CLASSES + 1
    k1, k2, k3, k4, k5 = jax.random.split(key, 5)

    logits = jax.random.normal(k1, (B, Q, C1), dtype=jnp.float32)
    # valid xyxy boxes (x1 < x2, y1 < y2)
    xy = jax.random.uniform(k2, (B, Q, 2), minval=0.0, maxval=0.5)
    wh = jax.random.uniform(k3, (B, Q, 2), minval=0.1, maxval=0.5)
    boxes = jnp.concatenate([xy, xy + wh], axis=-1)
    prediction = {'logits': logits, 'boxes': boxes, 'scores': logits}

    txy = jax.random.uniform(k4, (B, T, 2), minval=0.0, maxval=0.5)
    twh = jax.random.uniform(k5, (B, T, 2), minval=0.1, maxval=0.5)
    tgt_boxes = jnp.concatenate([txy, txy + twh], axis=-1)
    targets = [{'boxes': tgt_boxes[b],
                'labels': jnp.ones((T,), dtype=jnp.int32)} for b in range(B)]

    out = bipartite_matching_loss(prediction, targets)
    jax.block_until_ready(out['loss'])
    jax.block_until_ready(out['cardinality_error'])
    print("KERNEL_OK")
</pallas_src>

<mosaic_0001>
module attributes {stable_mosaic.version = 11 : i64} {
  func.func @_cardinality_kernel(%arg0: i32, %arg1: memref<16x2xf32, #tpu.memory_space<vmem>>, %arg2: memref<1x128xf32, #tpu.memory_space<vmem>>) attributes {dimension_semantics = [#tpu.dimension_semantics<arbitrary>], iteration_bounds = array<i64: 1>, scalar_prefetch = 0 : i64, scratch_operands = 0 : i64, tpu.core_type = #tpu.core_type<tc>, window_params = [{pipeline_mode = #tpu.pipeline_mode<synchronous>, transform_indices = @transform_0, window_bounds = array<i64: 16, 2>}, {pipeline_mode = #tpu.pipeline_mode<synchronous>, transform_indices = @transform_1, window_bounds = array<i64: 1, 128>}]} {
    %c0 = arith.constant 0 : index
    %c0_0 = arith.constant 0 : index
    %0 = vector.load %arg1[%c0, %c0_0] : memref<16x2xf32, #tpu.memory_space<vmem>>, vector<16x2xf32>
    %1 = vector.extract_strided_slice %0 {offsets = [0, 1], sizes = [16, 1], strides = [1, 1]} : vector<16x2xf32> to vector<16x1xf32>
    %cst = arith.constant dense<0xFF800000> : vector<16xf32>
    %2 = vector.multi_reduction <maximumf>, %1, %cst [1] : vector<16x1xf32> to vector<16xf32>
    %3 = vector.shape_cast %2 : vector<16xf32> to vector<16x1xf32>
    %4 = vector.extract_strided_slice %0 {offsets = [0, 0], sizes = [16, 1], strides = [1, 1]} : vector<16x2xf32> to vector<16x1xf32>
    %5 = arith.cmpf ogt, %3, %4 : vector<16x1xf32>
    %6 = arith.extui %5 : vector<16x1xi1> to vector<16x1xi32>
    %7 = arith.sitofp %6 : vector<16x1xi32> to vector<16x1xf32>
    %8 = vector.shape_cast %7 : vector<16x1xf32> to vector<1x16x1xf32>
    %cst_1 = arith.constant dense<0.000000e+00> : vector<1xf32>
    %9 = vector.multi_reduction <add>, %8, %cst_1 [1, 2] : vector<1x16x1xf32> to vector<1xf32>
    %10 = vector.shape_cast %9 : vector<1xf32> to vector<1x1x1xf32>
    %11 = vector.extract %10[0, 0, 0] : f32 from vector<1x1x1xf32>
    %12 = vector.broadcast %11 : f32 to vector<1x1xf32>
    %13 = tpu.iota {dimensions = array<i32: 1>} : vector<1x128xi32>
    %c0_i32 = arith.constant 0 : i32
    %14 = vector.broadcast %c0_i32 : i32 to vector<1x128xi32>
    %15 = arith.cmpi eq, %13, %14 : vector<1x128xi32>
    %cst_2 = arith.constant 0.000000e+00 : f32
    %16 = vector.shape_cast %12 : vector<1x1xf32> to vector<1x1xf32>
    %17 = vector.broadcast %16 : vector<1x1xf32> to vector<1x128xf32>
    %18 = vector.broadcast %cst_2 : f32 to vector<1x128xf32>
    %19 = arith.select %15, %17, %18 : vector<1x128xi1>, vector<1x128xf32>
    %c0_3 = arith.constant 0 : index
    %c0_4 = arith.constant 0 : index
    %20 = vector.load %arg2[%c0_3, %c0_4] : memref<1x128xf32, #tpu.memory_space<vmem>>, vector<1x128xf32>
    tpu.vector_store %arg2[%c0_3, %c0_4], %19 {strides = array<i32>} : memref<1x128xf32, #tpu.memory_space<vmem>>, vector<1x128xf32>,
    return
  }
  func.func @transform_0(%arg0: i32) -> (i32, i32) {
    %c0_i32 = arith.constant 0 : i32
    %c0_i32_0 = arith.constant 0 : i32
    %c0_i32_1 = arith.constant 0 : i32
    return %c0_i32, %c0_i32_0 : i32, i32
  }
  func.func @transform_1(%arg0: i32) -> (i32, i32) {
    %c0_i32 = arith.constant 0 : i32
    %c0_i32_0 = arith.constant 0 : i32
    %c0_i32_1 = arith.constant 0 : i32
    return %c0_i32, %c0_i32_0 : i32, i32
  }
}

</mosaic_0001>

<llo_original>
// kernel: cardinality_count.1
$region0: #{cardinality_count.1}
  #allocation0 [shape = 'u32[]', space=smem, size = 0x4, offset = 0x4, fixed_abs, tag = 'smem constant byte address 0x4 - core index']
  #allocation1 [shape = 'u32[144,128]{1,0:T(1,128)}', space=vmem, size = 0x12000, scoped, tag = 'internal scratch']
  %s0 = inlined_call_operand.vmem [shape: f32[16,2], index: 0, kind: input, shape index: {}]
  %s1 = inlined_call_operand.hbm [shape: f32[1,128], index: 1, kind: output, shape index: {}]
  %s2 = sld [smem:[#allocation0]]
  $region14: #{cardinality_count.1} parent=0
    _
  %s4 = ssub.s32 1, %s2
  %s5 = scalar_select 0, %s4, %s2
  $region1: #{cardinality_count.1} parent=0
    #allocation2 [shape = 'u8[512]{0}', space=vmem, size = 0x400, scoped, tag = 'output window, operand 0, single buffered']
    #allocation3 [shape = 's32[1]{0}', space=sflag, size = 0x4, scoped, tag = 'scoped memory for cardinality_count.1']
    %6 = vsyncpa [#allocation3], 0
    // Predicated region
    $region2: #{cardinality_count.1} parent=1 // pred_check
      _
    $region3: #{cardinality_count.1} parent=1 // pred_check_branch
      %8 = sbr.rel (0) target = $region5
    $region4: #{cardinality_count.1} parent=1 // pred_region
      _
    $region5: #{cardinality_count.1} parent=1 // pred_fallthru
      _
    %v9 = vld [vmem:[%s0] sm:$0xff]
    %v10 = vld [vmem:[%s0 + $0x8] sm:$0xff]
    %13 = vrot.lane.b32.xlu0 %v9, 1
    %v14 = vpop.permute.xlu0 %13
    %15 = vrot.lane.b32.xlu0 %v10, 1
    %v16 = vpop.permute.xlu0 %15
    %vm19 = vcmp.gt.f32.partialorder %v9, %v14
    %vm20 = vcmp.gt.f32.partialorder %v10, %v16
    %v21 = vsel %vm19, 1, 0
    %v22 = vsel %vm20, 1, 0
    %v23 = vcvt.s32.f32 %v21
    %v24 = vcvt.s32.f32 %v22
    %27 = vrot.lane.b32.xlu0 %v23, 127
    %v28 = vpop.permute.xlu0 %27
    %29 = vrot.lane.b32.xlu0 %v24, 127
    %v30 = vpop.permute.xlu0 %29
    %vm33 = vcmask 7168
    %v34 = vsel %vm33, %v28, 0.0
    %v35 = vsel %vm33, %v30, 0.0
    %v36 = vadd.f32 %v34, %v35
    %37 = vadd.xlane.f32.xlu0 %v36
    %v38 = vpop.xlane.xlu0 %37
    %v39 = vrot.slane %v38, 4
    %v40 = vadd.f32 %v38, %v39
    %v41 = vrot.slane %v40, 2
    %v42 = vadd.f32 %v40, %v41
    %v43 = vrot.slane %v42, 1
    %v44 = vadd.f32 %v42, %v43
    %s45 = vtos %v44
    %v46 = vlaneseq
    %v47 = vand.u32 %v46, 127
    %vm48 = vcmp.eq.s32.totalorder %v47, 0
    %v49 = vstv %s45
    %v50 = vsel %vm48, %v49, 0.0
    %51 = vst [vmem:[#allocation2] sm:$0x1] %v50
    // Predicated region
    $region6: #{cardinality_count.1} parent=1 // pred_check
      _
    $region7: #{cardinality_count.1} parent=1 // pred_check_branch
      %53 = sbr.rel (0) target = $region9
    $region8: #{cardinality_count.1} parent=1 // pred_region
      %s55 = ssub.s32 16, 16
      %56 = vsyncadd [#allocation3], %s55
      %s58 = sshll.u32 [#allocation2], 4
      %s59 = int_to_ptr.vmem [resolvable:$true] %s58
      %61 = dma.vmem_to_hbm [thread:$0]  %s59, 16, %s1, [#allocation3]
    $region9: #{cardinality_count.1} parent=1 // pred_fallthru
      _
    // Predicated region
    $region10: #{cardinality_count.1} parent=1 // pred_check
      _
    $region11: #{cardinality_count.1} parent=1 // pred_check_branch
      %63 = sbr.rel (0) target = $region13
    $region12: #{cardinality_count.1} parent=1 // pred_region
      %64 = dma.done [#allocation3], 16
    $region13: #{cardinality_count.1} parent=1 // pred_fallthru
      _
    %65 = vsyncpa [#allocation3], 1

</llo_original>
